<compile_context>
chip_gen: v7x
topology: tpu7x:2x2x1
jax: 0.10.0
libtpu: 0.0.40
codegen_flags: <defaults>
</compile_context>

<pallas_src>
import functools

import jax
import jax.numpy as jnp
from jax.experimental import pallas as pl
from jax.experimental.pallas import tpu as pltpu


# ----------------------------------------------------------------------------
# Kernel:  out = x @ W + b     (W = W1.T @ W2.T pre-combined, shape (K, 2))
# ----------------------------------------------------------------------------

def _reward_head_kernel(x_ref, w_ref, b_ref, o_ref):
    # x_ref: (tile_m, K)   bf16 (or f32)  -- one batch-row tile
    # w_ref: (K, 2)        resident combined weight
    # b_ref: (1, 2)        resident combined bias (f32)
    # o_ref: (tile_m, 2)   f32 output tile
    y = jnp.dot(x_ref[...], w_ref[...], preferred_element_type=jnp.float32)
    o_ref[...] = (y + b_ref[...]).astype(o_ref.dtype)


def _pick_tile_m(batch, itemsize):
    """Largest convenient row tile that divides `batch` exactly (no pad path)."""
    sub = 16 if itemsize < 4 else 8          # bf16 sublane packing -> mult of 16
    if batch <= 1024:
        return batch                          # single tile, full batch
    for t in range(1024, sub - 1, -sub):
        if batch % t == 0:
            return t
    return batch                              # fallback: whole batch in one tile


# ----------------------------------------------------------------------------
# One-time parameter preparation (torch nn.Linear layout in, kernel layout out)
# ----------------------------------------------------------------------------

def prepare_params(torch_params, *, compute_dtype=jnp.bfloat16):
    """Collapse the two Linears into a single (K, 2) weight + (1, 2) bias."""
    w1 = torch_params["rf_w"].astype(jnp.float32)   # (128, K)  torch layout
    b1 = torch_params["rf_b"].astype(jnp.float32)   # (128,)
    w2 = torch_params["rc_w"].astype(jnp.float32)   # (2, 128)
    b2 = torch_params["rc_b"].astype(jnp.float32)   # (2,)

    w = w1.T @ w2.T                                  # (K, 2), combined in f32
    b = b1 @ w2.T + b2                               # (2,)
    return {
        "w": w.astype(compute_dtype),                # streamed to MXU
        "b": b.reshape(1, -1).astype(jnp.float32),   # added to f32 accumulator
    }


# ----------------------------------------------------------------------------
# Forward
# ----------------------------------------------------------------------------

def reward_head_forward(prepared, x, *, tile_m=None):
    """x: (B, size) -> (B, 2).  `prepared` comes from prepare_params (no per-call
    transposes / casts / pads in this wrapper)."""
    w, b = prepared["w"], prepared["b"]
    B, K = x.shape
    N = w.shape[1]                                   # 2

    if tile_m is None or B % tile_m != 0:
        tile_m = _pick_tile_m(B, jnp.dtype(x.dtype).itemsize)
    n_tiles = B // tile_m

    return pl.pallas_call(
        _reward_head_kernel,
        grid=(n_tiles,),
        in_specs=[
            pl.BlockSpec((tile_m, K), lambda i: (i, 0)),   # batch-row tile of x
            pl.BlockSpec((K, N), lambda i: (0, 0)),        # combined W, resident
            pl.BlockSpec((1, N), lambda i: (0, 0)),        # combined b, resident
        ],
        out_specs=pl.BlockSpec((tile_m, N), lambda i: (i, 0)),
        out_shape=jax.ShapeDtypeStruct((B, N), jnp.float32),
        compiler_params=pltpu.CompilerParams(
            dimension_semantics=("parallel",)),            # dual-TC on v7x
    )(x, w, b)


# ----------------------------------------------------------------------------
# Deterministic parameter init (torch nn.Linear layout: weight (out, in))
# ----------------------------------------------------------------------------

def init_params(key, size):
    k1, k2, k3, k4 = jax.random.split(key, 4)
    scale = 0.1
    return {
        "rf_w": scale * jax.random.normal(k1, (128, size), dtype=jnp.float32),
        "rf_b": scale * jax.random.normal(k2, (128,), dtype=jnp.float32),
        "rc_w": scale * jax.random.normal(k3, (2, 128), dtype=jnp.float32),
        "rc_b": scale * jax.random.normal(k4, (2,), dtype=jnp.float32),
    }


# ----------------------------------------------------------------------------
# Main
# ----------------------------------------------------------------------------

if __name__ == "__main__":
    # size = 5 * hidden_size (how RewardHead is used inside WorldModel, HS=16).
    # batch / tile_m chosen so the grid has 2 balanced "parallel" tiles (v7x
    # dual-TC) with bf16-legal tile_m (multiple of 16) and no padding.
    size = 80
    batch = 256
    tile_m = 128

    key = jax.random.PRNGKey(0)
    kx, kp = jax.random.split(key)
    x_f32 = jax.random.normal(kx, (batch, size), dtype=jnp.float32)
    x = x_f32.astype(jnp.bfloat16)                 # bf16 activations streamed in

    torch_params = init_params(kp, size)
    prepared = prepare_params(torch_params)        # one-time collapse + layout

    fwd = jax.jit(functools.partial(reward_head_forward, tile_m=tile_m))
    out = fwd(prepared, x)
    jax.block_until_ready(out)

    # Pure-JAX reference (same bf16 x, original two-linear torch semantics, f32).
    xr = x.astype(jnp.float32)
    ref = (xr @ torch_params["rf_w"].T + torch_params["rf_b"]) \
        @ torch_params["rc_w"].T + torch_params["rc_b"]

    assert out.shape == (batch, 2), out.shape
    assert bool(jnp.all(jnp.isfinite(out)))
    assert bool(jnp.allclose(out, ref, atol=2e-2, rtol=2e-2)), \
        float(jnp.max(jnp.abs(out - ref)))
    print("KERNEL_OK")
</pallas_src>

<mosaic_0001>
module attributes {stable_mosaic.version = 11 : i64} {
  func.func @_reward_head_kernel(%arg0: i32, %arg1: memref<128x80xbf16, #tpu.memory_space<vmem>>, %arg2: memref<80x2xbf16, #tpu.memory_space<vmem>>, %arg3: memref<1x2xf32, #tpu.memory_space<vmem>>, %arg4: memref<128x2xf32, #tpu.memory_space<vmem>>) attributes {dimension_semantics = [#tpu.dimension_semantics<parallel>], iteration_bounds = array<i64: 2>, scalar_prefetch = 0 : i64, scratch_operands = 0 : i64, tpu.core_type = #tpu.core_type<tc>, window_params = [{transform_indices = @transform_0, window_bounds = array<i64: 128, 80>}, {pipeline_mode = #tpu.pipeline_mode<synchronous>, transform_indices = @transform_1, window_bounds = array<i64: 80, 2>}, {pipeline_mode = #tpu.pipeline_mode<synchronous>, transform_indices = @transform_2, window_bounds = array<i64: 1, 2>}, {transform_indices = @transform_3, window_bounds = array<i64: 128, 2>}]} {
    %c0 = arith.constant 0 : index
    %c0_0 = arith.constant 0 : index
    %0 = vector.load %arg1[%c0, %c0_0] : memref<128x80xbf16, #tpu.memory_space<vmem>>, vector<128x80xbf16>
    %c0_1 = arith.constant 0 : index
    %c0_2 = arith.constant 0 : index
    %1 = vector.load %arg2[%c0_1, %c0_2] : memref<80x2xbf16, #tpu.memory_space<vmem>>, vector<80x2xbf16>
    %cst = arith.constant dense<0.000000e+00> : vector<128x2xf32>
    %2 = tpu.matmul %0, %1, %cst {dimension_numbers = #tpu.dot_dimension_numbers<[1], [0], [0], [1], [0, 0, 1, 1], [], []>} : vector<128x80xbf16>, vector<80x2xbf16>, vector<128x2xf32> -> vector<128x2xf32>
    %c0_3 = arith.constant 0 : index
    %c0_4 = arith.constant 0 : index
    %3 = vector.load %arg3[%c0_3, %c0_4] : memref<1x2xf32, #tpu.memory_space<vmem>>, vector<1x2xf32>
    %4 = vector.broadcast %3 : vector<1x2xf32> to vector<128x2xf32>
    %5 = arith.addf %2, %4 : vector<128x2xf32>
    %c0_5 = arith.constant 0 : index
    %c0_6 = arith.constant 0 : index
    %6 = vector.load %arg4[%c0_5, %c0_6] : memref<128x2xf32, #tpu.memory_space<vmem>>, vector<128x2xf32>
    tpu.vector_store %arg4[%c0_5, %c0_6], %5 {strides = array<i32>} : memref<128x2xf32, #tpu.memory_space<vmem>>, vector<128x2xf32>,
    return
  }
  func.func @transform_0(%arg0: i32) -> (i32, i32) {
    %c0_i32 = arith.constant 0 : i32
    %c0_i32_0 = arith.constant 0 : i32
    return %arg0, %c0_i32 : i32, i32
  }
  func.func @transform_1(%arg0: i32) -> (i32, i32) {
    %c0_i32 = arith.constant 0 : i32
    %c0_i32_0 = arith.constant 0 : i32
    %c0_i32_1 = arith.constant 0 : i32
    return %c0_i32, %c0_i32_0 : i32, i32
  }
  func.func @transform_2(%arg0: i32) -> (i32, i32) {
    %c0_i32 = arith.constant 0 : i32
    %c0_i32_0 = arith.constant 0 : i32
    %c0_i32_1 = arith.constant 0 : i32
    return %c0_i32, %c0_i32_0 : i32, i32
  }
  func.func @transform_3(%arg0: i32) -> (i32, i32) {
    %c0_i32 = arith.constant 0 : i32
    %c0_i32_0 = arith.constant 0 : i32
    return %arg0, %c0_i32 : i32, i32
  }
}

</mosaic_0001>

<llo_original>
// kernel: reward_head_forward.1
$region0: #{reward_head_forward.1}
  #allocation0 [shape = 'u32[]', space=smem, size = 0x4, offset = 0x4, fixed_abs, tag = 'smem constant byte address 0x4 - core index']
  #allocation1 [shape = 'u32[144,128]{1,0:T(1,128)}', space=vmem, size = 0x12000, scoped, tag = 'internal scratch']
  %s0 = inlined_call_operand.vmem [shape: bf16[256,80], index: 0, kind: input, shape index: {}]
  %s1 = inlined_call_operand.vmem [shape: bf16[80,2], index: 1, kind: input, shape index: {}]
  %s2 = inlined_call_operand.vmem [shape: f32[1,2], index: 2, kind: input, shape index: {}]
  %s3 = inlined_call_operand.vmem [shape: f32[256,2], index: 3, kind: output, shape index: {}]
  %s4 = sld [smem:[#allocation0]]
  $region45: #{reward_head_forward.1} parent=0
    _
  %s6 = ssub.s32 1, %s4
  %s7 = scalar_select 0, %s6, %s4
  loop: start=0, step=1, limit=4
  $region2: #{reward_head_forward.1} parent=0 // loop_pre_header
    _
  $region3: #{reward_head_forward.1} parent=0 // loop_header
    %s9 = sphi 0, %s13
    %p10 = scmp.ge.s32.totalorder %s9, 4
    %s19 = sphi 0, %s21
    %s22 = sphi 0, %s19
    %s23 = sphi 0, %s22
    %s39 = sphi 0, %s23
    %s43 = sphi 0, %s43
    %s45 = sphi 0, %s43
    %s46 = sphi 0, %s45
    %s60 = sphi 0, %s46
    %s64 = sphi 0, %s64
    %s66 = sphi 0, %s64
    %s67 = sphi 0, %s66
    %s81 = sphi 0, %s67
    %s87 = sphi 0, %s89
    %s90 = sphi 0, %s87
    %s91 = sphi 0, %s90
    %s107 = sphi 0, %s91
  $region4: #{reward_head_forward.1} parent=0 // loop_header_branch
    %12 = sbr.rel (%p10) target = $region8
  $region5: #{reward_head_forward.1} parent=0 // loop_body
    %s14 = ssub.s32 %s9, 1
    %s15 = ssub.s32 %s9, 2
    %s16 = sadd.s32 %s9, 1
    %s17 = ssub.s32 %s9, %s16
    %p18 = scmp.eq.s32.totalorder %s17, 0
    %s20 = sadd.s32 %s19, 1
    %s21 = scalar_select %p18, %s19, %s20
    %p24 = pneg %p18
    %p25 = scmp.eq.s32.totalorder %s9, 1
    %p26 = por %p24, %p25
    %p27 = scmp.ne.s32.totalorder %s19, %s22
    %p28 = scmp.eq.s32.totalorder %s9, 0
    %p29 = por %p27, %p28
    %p30 = scmp.ne.s32.totalorder %s19, %s22
    %p31 = scmp.eq.s32.totalorder %s14, 1
    %p32 = por %p30, %p31
    %p33 = scmp.ne.s32.totalorder %s22, %s23
    %p34 = scmp.eq.s32.totalorder %s14, 0
    %p35 = por %p33, %p34
    %p36 = scmp.ne.s32.totalorder %s22, %s23
    %p37 = scmp.eq.s32.totalorder %s15, 1
    %p38 = por %p36, %p37
    %p40 = scmp.ne.s32.totalorder %s23, %s39
    %p41 = scmp.eq.s32.totalorder %s15, 0
    %p42 = por %p40, %p41
    %s44 = sadd.s32 %s43, 1
    %p47 = scmp.eq.s32.totalorder %s9, 1
    %p48 = scmp.ne.s32.totalorder %s43, %s45
    %p49 = scmp.eq.s32.totalorder %s9, 0
    %p50 = por %p48, %p49
    %p51 = scmp.ne.s32.totalorder %s43, %s45
    %p52 = scmp.eq.s32.totalorder %s14, 1
    %p53 = por %p51, %p52
    %p54 = scmp.ne.s32.totalorder %s45, %s46
    %p55 = scmp.eq.s32.totalorder %s14, 0
    %p56 = por %p54, %p55
    %p57 = scmp.ne.s32.totalorder %s45, %s46
    %p58 = scmp.eq.s32.totalorder %s15, 1
    %p59 = por %p57, %p58
    %p61 = scmp.ne.s32.totalorder %s46, %s60
    %p62 = scmp.eq.s32.totalorder %s15, 0
    %p63 = por %p61, %p62
    %s65 = sadd.s32 %s64, 1
    %p68 = scmp.eq.s32.totalorder %s9, 1
    %p69 = scmp.ne.s32.totalorder %s64, %s66
    %p70 = scmp.eq.s32.totalorder %s9, 0
    %p71 = por %p69, %p70
    %p72 = scmp.ne.s32.totalorder %s64, %s66
    %p73 = scmp.eq.s32.totalorder %s14, 1
    %p74 = por %p72, %p73
    %p75 = scmp.ne.s32.totalorder %s66, %s67
    %p76 = scmp.eq.s32.totalorder %s14, 0
    %p77 = por %p75, %p76
    %p78 = scmp.ne.s32.totalorder %s66, %s67
    %p79 = scmp.eq.s32.totalorder %s15, 1
    %p80 = por %p78, %p79
    %p82 = scmp.ne.s32.totalorder %s67, %s81
    %p83 = scmp.eq.s32.totalorder %s15, 0
    %p84 = por %p82, %p83
    %s85 = ssub.s32 %s9, %s16
    %p86 = scmp.eq.s32.totalorder %s85, 0
    %s88 = sadd.s32 %s87, 1
    %s89 = scalar_select %p86, %s87, %s88
    %p92 = pneg %p86
    %p93 = scmp.eq.s32.totalorder %s9, 1
    %p94 = por %p92, %p93
    %p95 = scmp.ne.s32.totalorder %s87, %s90
    %p96 = scmp.eq.s32.totalorder %s9, 0
    %p97 = por %p95, %p96
    %p98 = scmp.ne.s32.totalorder %s87, %s90
    %p99 = scmp.eq.s32.totalorder %s14, 1
    %p100 = por %p98, %p99
    %p101 = scmp.ne.s32.totalorder %s90, %s91
    %p102 = scmp.eq.s32.totalorder %s14, 0
    %p103 = por %p101, %p102
    %p104 = scmp.ne.s32.totalorder %s90, %s91
    %p105 = scmp.eq.s32.totalorder %s15, 1
    %p106 = por %p104, %p105
    %p108 = scmp.ne.s32.totalorder %s91, %s107
    %p109 = scmp.eq.s32.totalorder %s15, 0
    %p110 = por %p108, %p109
    %p111 = scmp.le.s32.totalorder 1, %s9
    %p112 = scmp.lt.s32.totalorder %s9, 3
    %p113 = pnand %p111, %p112
    %p114 = pneg %p113
    // Predicated region
    $region9: #{reward_head_forward.1} parent=5 // pred_check
      _
    $region10: #{reward_head_forward.1} parent=5 // pred_check_branch
      %116 = sbr.rel (%p113) target = $region12
    $region11: #{reward_head_forward.1} parent=5 // pred_region
      %s117 = ssub.s32 %s9, 1
      // Predicated region
      $region13: #{reward_head_forward.1} parent=11 // pred_check
        %p118 = pneg %p56
      $region14: #{reward_head_forward.1} parent=11 // pred_check_branch
        %120 = sbr.rel (%p118) target = $region16
      $region15: #{reward_head_forward.1} parent=11 // pred_region
        _
      $region16: #{reward_head_forward.1} parent=11 // pred_fallthru
        _
      // Predicated region
      $region17: #{reward_head_forward.1} parent=11 // pred_check
        %p121 = pneg %p77
      $region18: #{reward_head_forward.1} parent=11 // pred_check_branch
        %123 = sbr.rel (%p121) target = $region20
      $region19: #{reward_head_forward.1} parent=11 // pred_region
        _
      $region20: #{reward_head_forward.1} parent=11 // pred_fallthru
        _
    $region12: #{reward_head_forward.1} parent=5 // pred_fallthru
      _
    %p124 = scmp.lt.s32.totalorder %s9, 2
    // Predicated region
    $region21: #{reward_head_forward.1} parent=5 // pred_check
      %p125 = pneg %p124
    $region22: #{reward_head_forward.1} parent=5 // pred_check_branch
      %127 = sbr.rel (%p125) target = $region24
    $region23: #{reward_head_forward.1} parent=5 // pred_region
      // Predicated region
      $region25: #{reward_head_forward.1} parent=23 // pred_check
        %p128 = pneg %p29
      $region26: #{reward_head_forward.1} parent=23 // pred_check_branch
        %130 = sbr.rel (%p128) target = $region28
      $region27: #{reward_head_forward.1} parent=23 // pred_region
        %s131 = smul.u32 16, %s9
        %p132 = scmp.lt.s32.totalorder %s131, 31
        %s133 = scalar_select %p132, %s131, 31
        %s134 = smul.addr %s133, 4
        %s135 = scalar_lea.vmem %s0, %s134
        %s136 = smul.u32 16, %s9
      $region28: #{reward_head_forward.1} parent=23 // pred_fallthru
        _
    $region24: #{reward_head_forward.1} parent=5 // pred_fallthru
      _
    %p137 = scmp.le.s32.totalorder 1, %s9
    %p138 = scmp.lt.s32.totalorder %s9, 3
    %p139 = pnand %p137, %p138
    %p140 = pneg %p139
    // Predicated region
    $region29: #{reward_head_forward.1} parent=5 // pred_check
      _
    $region30: #{reward_head_forward.1} parent=5 // pred_check_branch
      %142 = sbr.rel (%p139) target = $region32
    $region31: #{reward_head_forward.1} parent=5 // pred_region
      %s143 = ssub.s32 %s9, 1
      %s144 = smul.u32 16, %s14
      %p145 = scmp.lt.s32.totalorder %s144, 31
      %s146 = scalar_select %p145, %s144, 31
      %s147 = smul.addr %s146, 4
      %s148 = scalar_lea.vmem %s0, %s147
      %p149 = pneg %p35
      %p150 = pneg %p32
      %p151 = pneg %p56
      %p152 = pneg %p53
      %p153 = pneg %p77
      %p154 = pneg %p74
      %p155 = pneg %p103
      %p156 = pneg %p100
      %s157 = smul.u32 16, %s14
      %p158 = scmp.lt.s32.totalorder %s157, 31
      %s159 = scalar_select %p158, %s157, 31
      %s160 = smul.addr %s159, 8
      %s161 = scalar_lea.vmem %s3, %s160
      %s162 = smul.u32 16, %s14
      %p163 = scmp.lt.s32.totalorder %s162, 31
      %s164 = scalar_select %p163, %s162, 31
      %s165 = smul.addr %s164, 4
      %s166 = scalar_lea.vmem %s0, %s165
      %s167 = smul.u32 16, %s14
      %s168 = smul.u32 16, %s14
      %p169 = scmp.lt.s32.totalorder %s168, 31
      %s170 = scalar_select %p169, %s168, 31
      %s171 = smul.addr %s170, 8
      %s172 = scalar_lea.vmem %s3, %s171
      %s173 = smul.u32 16, %s14
      %v175 = vld [vmem:[%s166] sm:$0xf]
      %v176 = vld [vmem:[%s166 + $0x4] sm:$0xf]
      %v177 = vld [vmem:[%s166 + $0x8] sm:$0xf]
      %v178 = vld [vmem:[%s166 + $0xc] sm:$0xf]
      %v179 = vld [vmem:[%s166 + $0x10] sm:$0xf]
      %v180 = vld [vmem:[%s166 + $0x14] sm:$0xf]
      %v181 = vld [vmem:[%s166 + $0x18] sm:$0xf]
      %v182 = vld [vmem:[%s166 + $0x1c] sm:$0xf]
      %v183 = vld [vmem:[%s166 + $0x20] sm:$0xf]
      %v184 = vld [vmem:[%s166 + $0x24] sm:$0xf]
      %v185 = vld [vmem:[%s166 + $0x28] sm:$0xf]
      %v186 = vld [vmem:[%s166 + $0x2c] sm:$0xf]
      %v187 = vld [vmem:[%s166 + $0x30] sm:$0xf]
      %v188 = vld [vmem:[%s166 + $0x34] sm:$0xf]
      %v189 = vld [vmem:[%s166 + $0x38] sm:$0xf]
      %v190 = vld [vmem:[%s166 + $0x3c] sm:$0xf]
      %v191 = vld [vmem:[%s1] sm:$0xf]
      %v192 = vld [vmem:[%s1 + $0x4] sm:$0xf]
      %v193 = vld [vmem:[%s1 + $0x8] sm:$0xf]
      %v194 = vld [vmem:[%s1 + $0xc] sm:$0xf]
      %v195 = vld [vmem:[%s1 + $0x10] sm:$0xf]
      %v196 = vld [vmem:[%s1 + $0x14] sm:$0xf]
      %v197 = vld [vmem:[%s1 + $0x18] sm:$0xf]
      %v198 = vld [vmem:[%s1 + $0x1c] sm:$0xf]
      %v199 = vld [vmem:[%s1 + $0x20] sm:$0xf]
      %v200 = vld [vmem:[%s1 + $0x24] sm:$0xf]
      %v201 = vld [vmem:[%s2] sm:$0x1]
      %v203 = vlaneseq
      %v204 = vshrl.u32 %v203, 7
      %v205 = vsub.s32 0, %v204
      %v206 = vrot.slane %v201, %v205
      %v224 = vunpack.c.l.b16 %v175
      %v225 = vunpack.c.l.b16 %v176
      %v226 = vunpack.c.l.b16 %v177
      %v227 = vunpack.c.l.b16 %v178
      %v228 = vunpack.c.l.b16 %v179
      %v229 = vunpack.c.l.b16 %v180
      %v230 = vunpack.c.l.b16 %v181
      %v231 = vunpack.c.l.b16 %v182
      %v232 = vunpack.c.l.b16 %v183
      %v233 = vunpack.c.l.b16 %v184
      %v234 = vunpack.c.l.b16 %v185
      %v235 = vunpack.c.l.b16 %v186
      %v236 = vunpack.c.l.b16 %v187
      %v237 = vunpack.c.l.b16 %v188
      %v238 = vunpack.c.l.b16 %v189
      %v239 = vunpack.c.l.b16 %v190
      %v240 = vpack.c.b16 %v225, %v224
      %v241 = vpack.c.b16 %v227, %v226
      %v242 = vpack.c.b16 %v229, %v228
      %v243 = vpack.c.b16 %v231, %v230
      %v244 = vpack.c.b16 %v233, %v232
      %v245 = vpack.c.b16 %v235, %v234
      %v246 = vpack.c.b16 %v237, %v236
      %v247 = vpack.c.b16 %v239, %v238
      %v258 = vunpack.c.l.b16 %v191
      %v259 = vunpack.c.l.b16 %v192
      %v260 = vunpack.c.l.b16 %v193
      %v261 = vunpack.c.l.b16 %v194
      %v262 = vunpack.c.l.b16 %v195
      %v263 = vunpack.c.l.b16 %v196
      %v264 = vunpack.c.l.b16 %v197
      %v265 = vunpack.c.l.b16 %v198
      %v266 = vunpack.c.l.b16 %v199
      %v267 = vunpack.c.l.b16 %v200
      %v268 = vpack.c.b16 %v259, %v258
      %v269 = vpack.c.b16 %v261, %v260
      %v270 = vpack.c.b16 %v263, %v262
      %v271 = vpack.c.b16 %v265, %v264
      %v272 = vpack.c.b16 %v267, %v266
      %vm278 = vcmask 654336
      %v280 = vsel %vm278, %v240, 0
      %v283 = vsel %vm278, %v241, 0
      %v286 = vsel %vm278, %v242, 0
      %v289 = vsel %vm278, %v243, 0
      %v292 = vsel %vm278, %v244, 0
      %v295 = vsel %vm278, %v245, 0
      %v298 = vsel %vm278, %v246, 0
      %v301 = vsel %vm278, %v247, 0
      %303 = vmatprep.subr.bf16.mxu0 0
      %304 = vmatpush1.bf16.msra.mxu0 %v268
      %305 = vmatprep.subr.bf16.mxu0 0
      %306 = vmatpush1.bf16.msra.mxu0 %v269
      %307 = vmatprep.subr.bf16.mxu0 0
      %308 = vmatpush1.bf16.msra.mxu0 %v270
      %309 = vmatprep.subr.bf16.mxu0 0
      %310 = vmatpush1.bf16.msra.mxu0 %v271
      %311 = vmatprep.subr.bf16.mxu0 0
      %312 = vmatpush1.bf16.msra.mxu0 %v272
      %313 = vmatprep.subr.bf16.mxu0 0
      %314 = vmatpush1.bf16.msra.mxu0 0
      %315 = vmatprep.subr.bf16.mxu0 0
      %316 = vmatpush1.bf16.msra.mxu0 0
      %317 = vmatprep.subr.bf16.mxu0 0
      %318 = vmatpush1.bf16.msra.mxu0 0
      %319 = vmatprep.subr.bf16.mxu0 0
      %320 = vmatpush1.bf16.msra.mxu0 0
      %321 = vmatprep.subr.bf16.mxu0 0
      %322 = vmatpush1.bf16.msra.mxu0 0
      %323 = vmatprep.subr.bf16.mxu0 0
      %324 = vmatpush1.bf16.msra.mxu0 0
      %325 = vmatprep.subr.bf16.mxu0 0
      %326 = vmatpush1.bf16.msra.mxu0 0
      %327 = vmatprep.subr.bf16.mxu0 0
      %328 = vmatpush1.bf16.msra.mxu0 0
      %329 = vmatprep.subr.bf16.mxu0 0
      %330 = vmatpush1.bf16.msra.mxu0 0
      %331 = vmatprep.subr.bf16.mxu0 0
      %332 = vmatpush1.bf16.msra.mxu0 0
      %333 = vmatprep.subr.bf16.mxu0 0
      %334 = vmatpush1.bf16.msra.mxu0 0
      %335 = vmatprep.mubr.bf16.mxu0 0
      %336 = vmatmul.mubr.bf16.gmra.mrb[0].mxu0 %v280
      %v337 = vpop.f32.mrb[0].mxu0
      %v338 = vadd.f32 %v206, %v337
      %v339 = vpop.f32.mrb[0].mxu0
      %v340 = vpop.f32.mrb[0].mxu0
      %v341 = vadd.f32 %v206, %v340
      %v342 = vpop.f32.mrb[0].mxu0
      %343 = vmatprep.mubr.bf16.mxu0 0
      %344 = vmatmul.mubr.bf16.gmra.mrb[0].mxu0 %v283
      %v345 = vpop.f32.mrb[0].mxu0
      %v346 = vadd.f32 %v206, %v345
      %v347 = vpop.f32.mrb[0].mxu0
      %v348 = vpop.f32.mrb[0].mxu0
      %v349 = vadd.f32 %v206, %v348
      %v350 = vpop.f32.mrb[0].mxu0
      %351 = vmatprep.mubr.bf16.mxu0 0
      %352 = vmatmul.mubr.bf16.gmra.mrb[0].mxu0 %v286
      %v353 = vpop.f32.mrb[0].mxu0
      %v354 = vadd.f32 %v206, %v353
      %v355 = vpop.f32.mrb[0].mxu0
      %v356 = vpop.f32.mrb[0].mxu0
      %v357 = vadd.f32 %v206, %v356
      %v358 = vpop.f32.mrb[0].mxu0
      %359 = vmatprep.mubr.bf16.mxu0 0
      %360 = vmatmul.mubr.bf16.gmra.mrb[0].mxu0 %v289
      %v361 = vpop.f32.mrb[0].mxu0
      %v362 = vadd.f32 %v206, %v361
      %v363 = vpop.f32.mrb[0].mxu0
      %v364 = vpop.f32.mrb[0].mxu0
      %v365 = vadd.f32 %v206, %v364
      %v366 = vpop.f32.mrb[0].mxu0
      %367 = vmatprep.mubr.bf16.mxu0 0
      %368 = vmatmul.mubr.bf16.gmra.mrb[0].mxu0 %v292
      %v369 = vpop.f32.mrb[0].mxu0
      %v370 = vadd.f32 %v206, %v369
      %v371 = vpop.f32.mrb[0].mxu0
      %v372 = vpop.f32.mrb[0].mxu0
      %v373 = vadd.f32 %v206, %v372
      %v374 = vpop.f32.mrb[0].mxu0
      %375 = vmatprep.mubr.bf16.mxu0 0
      %376 = vmatmul.mubr.bf16.gmra.mrb[0].mxu0 %v295
      %v377 = vpop.f32.mrb[0].mxu0
      %v378 = vadd.f32 %v206, %v377
      %v379 = vpop.f32.mrb[0].mxu0
      %v380 = vpop.f32.mrb[0].mxu0
      %v381 = vadd.f32 %v206, %v380
      %v382 = vpop.f32.mrb[0].mxu0
      %383 = vmatprep.mubr.bf16.mxu0 0
      %384 = vmatmul.mubr.bf16.gmra.mrb[0].mxu0 %v298
      %v385 = vpop.f32.mrb[0].mxu0
      %v386 = vadd.f32 %v206, %v385
      %v387 = vpop.f32.mrb[0].mxu0
      %v388 = vpop.f32.mrb[0].mxu0
      %v389 = vadd.f32 %v206, %v388
      %v390 = vpop.f32.mrb[0].mxu0
      %391 = vmatprep.mubr.bf16.mxu0 0
      %392 = vmatmul.mubr.bf16.gmra.mrb[0].mxu0 %v301
      %v393 = vpop.f32.mrb[0].mxu0
      %v394 = vadd.f32 %v206, %v393
      %v395 = vpop.f32.mrb[0].mxu0
      %v396 = vpop.f32.mrb[0].mxu0
      %v397 = vadd.f32 %v206, %v396
      %v398 = vpop.f32.mrb[0].mxu0
      %399 = vdwg.mxu0
      %vm400 = vcmask 15360
      %401 = vst.msk [vmem:[%s172] sm:$0xff] %vm400, %v338
      %402 = vst.msk [vmem:[%s172 + $0x8] sm:$0xff] %vm400, %v341
      %403 = vst.msk [vmem:[%s172 + $0x10] sm:$0xff] %vm400, %v346
      %404 = vst.msk [vmem:[%s172 + $0x18] sm:$0xff] %vm400, %v349
      %405 = vst.msk [vmem:[%s172 + $0x20] sm:$0xff] %vm400, %v354
      %406 = vst.msk [vmem:[%s172 + $0x28] sm:$0xff] %vm400, %v357
      %407 = vst.msk [vmem:[%s172 + $0x30] sm:$0xff] %vm400, %v362
      %408 = vst.msk [vmem:[%s172 + $0x38] sm:$0xff] %vm400, %v365
      %409 = vst.msk [vmem:[%s172 + $0x40] sm:$0xff] %vm400, %v370
      %410 = vst.msk [vmem:[%s172 + $0x48] sm:$0xff] %vm400, %v373
      %411 = vst.msk [vmem:[%s172 + $0x50] sm:$0xff] %vm400, %v378
      %412 = vst.msk [vmem:[%s172 + $0x58] sm:$0xff] %vm400, %v381
      %413 = vst.msk [vmem:[%s172 + $0x60] sm:$0xff] %vm400, %v386
      %414 = vst.msk [vmem:[%s172 + $0x68] sm:$0xff] %vm400, %v389
      %415 = vst.msk [vmem:[%s172 + $0x70] sm:$0xff] %vm400, %v394
      %416 = vst.msk [vmem:[%s172 + $0x78] sm:$0xff] %vm400, %v397
      %s417 = smul.u32 16, %s14
      %p418 = scmp.lt.s32.totalorder %s417, 31
      %s419 = scalar_select %p418, %s417, 31
      %s420 = smul.addr %s419, 8
      %s421 = scalar_lea.vmem %s3, %s420
      // Predicated region
      $region33: #{reward_head_forward.1} parent=31 // pred_check
        %p422 = pneg %p100
      $region34: #{reward_head_forward.1} parent=31 // pred_check_branch
        %424 = sbr.rel (%p422) target = $region36
      $region35: #{reward_head_forward.1} parent=31 // pred_region
        %s425 = smul.u32 16, %s14
      $region36: #{reward_head_forward.1} parent=31 // pred_fallthru
        _
    $region32: #{reward_head_forward.1} parent=5 // pred_fallthru
      _
    %p426 = scmp.le.s32.totalorder 2, %s9
    // Predicated region
    $region37: #{reward_head_forward.1} parent=5 // pred_check
      %p427 = pneg %p426
    $region38: #{reward_head_forward.1} parent=5 // pred_check_branch
      %429 = sbr.rel (%p427) target = $region40
    $region39: #{reward_head_forward.1} parent=5 // pred_region
      %s430 = ssub.s32 %s9, 2
      // Predicated region
      $region41: #{reward_head_forward.1} parent=39 // pred_check
        %p431 = pneg %p106
      $region42: #{reward_head_forward.1} parent=39 // pred_check_branch
        %433 = sbr.rel (%p431) target = $region44
      $region43: #{reward_head_forward.1} parent=39 // pred_region
        %s434 = smul.u32 16, %s15
        %p435 = scmp.lt.s32.totalorder %s434, 31
        %s436 = scalar_select %p435, %s434, 31
        %s437 = smul.addr %s436, 8
        %s438 = scalar_lea.vmem %s3, %s437
      $region44: #{reward_head_forward.1} parent=39 // pred_fallthru
        _
    $region40: #{reward_head_forward.1} parent=5 // pred_fallthru
      _
  $region6: #{reward_head_forward.1} parent=0 // loop_footer
    %s13 = sadd.s32 1, %s9
  $region7: #{reward_head_forward.1} parent=0 // loop_footer_branch
    %8 = sbr.rel target = $region3
  $region8: #{reward_head_forward.1} parent=0 // loop_exit
    _

</llo_original>
